<compile_context>
chip_gen: v7x
topology: tpu7x:2x2x1
jax: 0.10.0
libtpu: 0.0.40
codegen_flags: <defaults>
</compile_context>

<pallas_src>
import jax
import jax.numpy as jnp
from jax.experimental import pallas as pl
from jax.experimental.pallas import tpu as pltpu


def _patch_label_kernel(thr_ref, pw_ref, x_ref, o_ref):
    # thr_ref: (1, 1) f32 threshold in SMEM
    # pw_ref : (Wc, Wp) column-pooling matrix, resident in VMEM across the grid
    # x_ref  : (TM, ps, Wc) streamed block: TM patch-rows of ps image rows each
    # o_ref  : (TM, Wp) matching block of the flat (Rp, Wp) output
    x = x_ref[...].astype(jnp.float32)                                 # (TM, ps, Wc)
    t = jnp.sum(x, axis=1)                                             # (TM, Wc)  row pool (VPU/XLU)
    s = jnp.dot(t, pw_ref[...], preferred_element_type=jnp.float32)   # (TM, Wp)  col pool (MXU)
    o_ref[...] = (s > thr_ref[0, 0]).astype(jnp.float32)


def _vmem_capacity_bytes():
    try:
        return int(pltpu.get_tpu_info().vmem_capacity_bytes)
    except Exception:
        # Conservative default: v7x has 64 MiB per TensorCore.
        return 64 * 1024 * 1024


def _choose_tm(rp, ps, wc, block_budget_bytes=2 * 1024 * 1024):
    """Pick TM = patch-rows per grid step and the zero-padding needed on the
    patch-row axis.

      * TM is a multiple of 8 (output block sublane rule) and <= 256 (one MXU
        M-pass, modest blocks).
      * The lane-padded f32 input block (TM * ps * pad128(wc) * 4B) stays under
        ~block_budget_bytes so per-step pipeline overhead is amortized without
        blowing up VMEM.
      * Prefer a divisor of rp that leaves >= 2 grid steps (megacore / pipelining);
        otherwise pad rp up to a multiple of TM instead of one giant block.
    """
    lane_w = -(-wc // 128) * 128
    per_row = ps * lane_w * 4
    cap = (block_budget_bytes // per_row) // 8 * 8
    cap = max(8, min(256, cap))

    divisors = [tm for tm in range(8, cap + 1, 8) if rp % tm == 0]
    if divisors:
        multi = [tm for tm in divisors if rp // tm >= 2]
        tm = max(multi) if multi else max(divisors)
        return tm, 0

    # No aligned divisor: keep the streaming tiling and zero-pad the row axis.
    tm = min(cap, -(-rp // 8) * 8)
    pad = (-rp) % tm
    return tm, pad


def patch_label_gen(x, patch_size=16, threshold=0.5):
    """x: (N, 1, H, W) float array (NCHW). Returns (N, 1, H//ps, W//ps) float32."""
    N, C, H, W = x.shape
    assert C == 1, "Patch_label_gen operates on single-channel input"
    ps = patch_size
    Hp, Wp = H // ps, W // ps
    Hc, Wc = Hp * ps, Wp * ps          # strided conv drops any remainder

    # Flatten batch + patch-rows: (N, Hc, Wc) -> (N*Hp, ps, Wc). Free reshape.
    x3 = x[:, 0, :Hc, :Wc].reshape(N * Hp, ps, Wc)
    Rp = N * Hp

    TM, pad = _choose_tm(Rp, ps, Wc)
    if pad:
        x3 = jnp.pad(x3, ((0, pad), (0, 0), (0, 0)))
    Rp_pad = Rp + pad
    grid = (Rp_pad // TM,)

    # Column-pooling matrix (Wc, Wp): pw[k, c] = 1 iff k // ps == c.
    cols = jnp.arange(Wc, dtype=jnp.int32)
    pw = (cols[:, None] // ps == jnp.arange(Wp, dtype=jnp.int32)[None, :]).astype(jnp.float32)

    thr = jnp.full((1, 1), threshold, dtype=jnp.float32)

    # VMEM footprint estimate (lane padding + f32 intermediate + double buffers).
    lane_w = -(-Wc // 128) * 128
    wp_lane = -(-Wp // 128) * 128
    in_blk = TM * ps * lane_w * 4
    out_blk = TM * wp_lane * 4
    pw_blk = (-(-Wc // 8) * 8) * wp_lane * 4
    interm = TM * lane_w * 4
    needed = 2 * (in_blk + out_blk + pw_blk) + interm + (4 << 20)
    cap = _vmem_capacity_bytes()
    headroom_cap = max(cap - (8 << 20), 16 << 20)
    vmem_limit = int(min(max(needed, 16 << 20), headroom_cap))

    out = pl.pallas_call(
        _patch_label_kernel,
        out_shape=jax.ShapeDtypeStruct((Rp_pad, Wp), jnp.float32),
        grid=grid,
        in_specs=[
            pl.BlockSpec(memory_space=pltpu.MemorySpace.SMEM),   # threshold scalar
            pl.BlockSpec((Wc, Wp), lambda r: (0, 0)),            # resident col-pool matrix
            pl.BlockSpec((TM, ps, Wc), lambda r: (r, 0, 0)),     # streamed input rows
        ],
        out_specs=pl.BlockSpec((TM, Wp), lambda r: (r, 0)),
        compiler_params=pltpu.CompilerParams(
            dimension_semantics=("parallel",),
            vmem_limit_bytes=vmem_limit,
        ),
    )(thr, pw, x3)

    if pad:
        out = out[:Rp]
    return out.reshape(N, Hp, Wp)[:, None, :, :]


if __name__ == "__main__":
    key = jax.random.PRNGKey(0)
    N, C, H, W = 2, 1, 64, 64
    patch_size, threshold = 16, 0.5

    # Zero-centered values so the thresholded output is a nontrivial mix of 0/1.
    x = jax.random.normal(key, (N, C, H, W), dtype=jnp.float32) * 0.1

    out = patch_label_gen(x, patch_size=patch_size, threshold=threshold)
    out = jax.block_until_ready(out)

    # Pure-JAX reference of the ones-conv + threshold for a correctness check.
    sums = x[:, 0].reshape(
        N, H // patch_size, patch_size, W // patch_size, patch_size
    ).sum(axis=(2, 4))
    ref = (sums > threshold).astype(jnp.float32)[:, None, :, :]

    assert out.shape == (N, 1, H // patch_size, W // patch_size)
    assert out.dtype == jnp.float32
    assert jnp.array_equal(out, ref)

    print("KERNEL_OK")
</pallas_src>

<mosaic_0001>
module attributes {stable_mosaic.version = 11 : i64} {
  func.func @_patch_label_kernel(%arg0: i32, %arg1: memref<1x1xf32, #tpu.memory_space<smem>>, %arg2: memref<64x4xf32, #tpu.memory_space<vmem>>, %arg3: memref<8x16x64xf32, #tpu.memory_space<vmem>>, %arg4: memref<8x4xf32, #tpu.memory_space<vmem>>) attributes {dimension_semantics = [#tpu.dimension_semantics<parallel>], iteration_bounds = array<i64: 1>, scalar_prefetch = 0 : i64, scratch_operands = 0 : i64, tpu.core_type = #tpu.core_type<tc>, window_params = [{transform_indices = @transform_0, window_bounds = array<i64: 1, 1>}, {pipeline_mode = #tpu.pipeline_mode<synchronous>, transform_indices = @transform_1, window_bounds = array<i64: 64, 4>}, {transform_indices = @transform_2, window_bounds = array<i64: 8, 16, 64>}, {transform_indices = @transform_3, window_bounds = array<i64: 8, 4>}]} {
    %c0 = arith.constant 0 : index
    %c0_0 = arith.constant 0 : index
    %c0_1 = arith.constant 0 : index
    %0 = vector.load %arg3[%c0, %c0_0, %c0_1] : memref<8x16x64xf32, #tpu.memory_space<vmem>>, vector<8x16x64xf32>
    %cst = arith.constant dense<0.000000e+00> : vector<8x64xf32>
    %1 = vector.multi_reduction <add>, %0, %cst [1] : vector<8x16x64xf32> to vector<8x64xf32>
    %c0_2 = arith.constant 0 : index
    %c0_3 = arith.constant 0 : index
    %2 = vector.load %arg2[%c0_2, %c0_3] : memref<64x4xf32, #tpu.memory_space<vmem>>, vector<64x4xf32>
    %cst_4 = arith.constant dense<0.000000e+00> : vector<8x4xf32>
    %3 = tpu.matmul %1, %2, %cst_4 {dimension_numbers = #tpu.dot_dimension_numbers<[1], [0], [0], [1], [0, 0, 1, 1], [], []>} : vector<8x64xf32>, vector<64x4xf32>, vector<8x4xf32> -> vector<8x4xf32>
    %c0_5 = arith.constant 0 : index
    %c0_6 = arith.constant 0 : index
    %4 = memref.load %arg1[%c0_5, %c0_6] : memref<1x1xf32, #tpu.memory_space<smem>>
    %5 = vector.broadcast %4 : f32 to vector<8x4xf32>
    %6 = arith.cmpf ogt, %3, %5 : vector<8x4xf32>
    %7 = arith.extui %6 : vector<8x4xi1> to vector<8x4xi32>
    %8 = arith.sitofp %7 : vector<8x4xi32> to vector<8x4xf32>
    %c0_7 = arith.constant 0 : index
    %c0_8 = arith.constant 0 : index
    %9 = vector.load %arg4[%c0_7, %c0_8] : memref<8x4xf32, #tpu.memory_space<vmem>>, vector<8x4xf32>
    tpu.vector_store %arg4[%c0_7, %c0_8], %8 {strides = array<i32>} : memref<8x4xf32, #tpu.memory_space<vmem>>, vector<8x4xf32>,
    return
  }
  func.func @transform_0(%arg0: i32) -> (i32, i32) {
    %c0_i32 = arith.constant 0 : i32
    %c0_i32_0 = arith.constant 0 : i32
    %c0_i32_1 = arith.constant 0 : i32
    return %c0_i32, %c0_i32_0 : i32, i32
  }
  func.func @transform_1(%arg0: i32) -> (i32, i32) {
    %c0_i32 = arith.constant 0 : i32
    %c0_i32_0 = arith.constant 0 : i32
    %c0_i32_1 = arith.constant 0 : i32
    return %c0_i32, %c0_i32_0 : i32, i32
  }
  func.func @transform_2(%arg0: i32) -> (i32, i32, i32) {
    %c0_i32 = arith.constant 0 : i32
    %c0_i32_0 = arith.constant 0 : i32
    %c0_i32_1 = arith.constant 0 : i32
    return %arg0, %c0_i32, %c0_i32_0 : i32, i32, i32
  }
  func.func @transform_3(%arg0: i32) -> (i32, i32) {
    %c0_i32 = arith.constant 0 : i32
    %c0_i32_0 = arith.constant 0 : i32
    return %arg0, %c0_i32 : i32, i32
  }
}

</mosaic_0001>

<llo_original>
// kernel: tpu_custom_call.1
$region0: #{tpu_custom_call.1}
  #allocation0 [shape = 'u32[]', space=smem, size = 0x4, offset = 0x4, fixed_abs, tag = 'smem constant byte address 0x4 - core index']
  #allocation1 [shape = 'u32[144,128]{1,0:T(1,128)}', space=vmem, size = 0x12000, scoped, tag = 'internal scratch']
  #allocation2 [shape = 'f32[1,1]{1,0:T(1,128)S(6)}', space=smem, size = 0x200, scoped, tag = 'scoped memory for tpu_custom_call.1']
  %s0 = inlined_call_operand.<no memory space> [shape: f32[1,1], index: 0, kind: input, shape index: {}]
  %s1 = inlined_call_operand.vmem [shape: f32[64,4], index: 1, kind: input, shape index: {}]
  %s2 = inlined_call_operand.hbm [shape: f32[8,16,64], index: 2, kind: input, shape index: {}]
  %s3 = inlined_call_operand.vmem [shape: f32[8,4], index: 3, kind: output, shape index: {}]
  %s4 = sld [smem:[#allocation0]]
  $region26: #{tpu_custom_call.1} parent=0
    _
  %s6 = ssub.s32 1, %s4
  %s7 = scalar_select 0, %s6, %s4
  %8 = sst [smem:[#allocation2]] %s0
  $region1: #{tpu_custom_call.1} parent=0
    #allocation3 [shape = 'u8[65536]{0}', space=vmem, size = 0x10000, scoped, tag = 'input window, operand 2, single buffered']
    #allocation4 [shape = 's32[1]{0}', space=sflag, size = 0x4, scoped, tag = 'scoped memory for tpu_custom_call.1']
    %9 = vsyncpa [#allocation4], 0
    // Predicated region
    $region2: #{tpu_custom_call.1} parent=1 // pred_check
      _
    $region3: #{tpu_custom_call.1} parent=1 // pred_check_branch
      %11 = sbr.rel (0) target = $region5
    $region4: #{tpu_custom_call.1} parent=1 // pred_region
      _
    $region5: #{tpu_custom_call.1} parent=1 // pred_fallthru
      _
    // Predicated region
    $region6: #{tpu_custom_call.1} parent=1 // pred_check
      _
    $region7: #{tpu_custom_call.1} parent=1 // pred_check_branch
      %13 = sbr.rel (0) target = $region9
    $region8: #{tpu_custom_call.1} parent=1 // pred_region
      _
    $region9: #{tpu_custom_call.1} parent=1 // pred_fallthru
      _
    // Predicated region
    $region10: #{tpu_custom_call.1} parent=1 // pred_check
      _
    $region11: #{tpu_custom_call.1} parent=1 // pred_check_branch
      %15 = sbr.rel (0) target = $region13
    $region12: #{tpu_custom_call.1} parent=1 // pred_region
      %s17 = ssub.s32 2048, 2048
      %18 = vsyncadd [#allocation4], %s17
      %s19 = sshll.u32 [#allocation3], 4
      %s20 = int_to_ptr.vmem [resolvable:$true] %s19
      %25 = dma.hbm_to_vmem [thread:$0]  %s2, 2048, %s20, [#allocation4], 128, 128, 8
    $region13: #{tpu_custom_call.1} parent=1 // pred_fallthru
      _
    // Predicated region
    $region14: #{tpu_custom_call.1} parent=1 // pred_check
      _
    $region15: #{tpu_custom_call.1} parent=1 // pred_check_branch
      %27 = sbr.rel (0) target = $region17
    $region16: #{tpu_custom_call.1} parent=1 // pred_region
      %28 = dma.done [#allocation4], 2048
    $region17: #{tpu_custom_call.1} parent=1 // pred_fallthru
      _
    %v29 = vld [vmem:[#allocation3] sm:$0xff]
    %v30 = vld [vmem:[#allocation3 + $0x8] sm:$0xff]
    %v31 = vld [vmem:[#allocation3 + $0x10] sm:$0xff]
    %v32 = vld [vmem:[#allocation3 + $0x18] sm:$0xff]
    %v33 = vld [vmem:[#allocation3 + $0x20] sm:$0xff]
    %v34 = vld [vmem:[#allocation3 + $0x28] sm:$0xff]
    %v35 = vld [vmem:[#allocation3 + $0x30] sm:$0xff]
    %v36 = vld [vmem:[#allocation3 + $0x38] sm:$0xff]
    %v37 = vld [vmem:[#allocation3 + $0x40] sm:$0xff]
    %v38 = vld [vmem:[#allocation3 + $0x48] sm:$0xff]
    %v39 = vld [vmem:[#allocation3 + $0x50] sm:$0xff]
    %v40 = vld [vmem:[#allocation3 + $0x58] sm:$0xff]
    %v41 = vld [vmem:[#allocation3 + $0x60] sm:$0xff]
    %v42 = vld [vmem:[#allocation3 + $0x68] sm:$0xff]
    %v43 = vld [vmem:[#allocation3 + $0x70] sm:$0xff]
    %v44 = vld [vmem:[#allocation3 + $0x78] sm:$0xff]
    %vm45 = vcmask 523264
    %v46 = vsel %vm45, %v29, 0.0
    %v47 = vsel %vm45, %v30, 0.0
    %v48 = vadd.f32 %v46, %v47
    %v49 = vrot.slane %v48, 4
    %v50 = vadd.f32 %v48, %v49
    %v51 = vrot.slane %v50, 2
    %v52 = vadd.f32 %v50, %v51
    %v53 = vrot.slane %v52, 1
    %v54 = vadd.f32 %v52, %v53
    %v55 = vsel %vm45, %v31, 0.0
    %v56 = vsel %vm45, %v32, 0.0
    %v57 = vadd.f32 %v55, %v56
    %v58 = vrot.slane %v57, 4
    %v59 = vadd.f32 %v57, %v58
    %v60 = vrot.slane %v59, 2
    %v61 = vadd.f32 %v59, %v60
    %v62 = vrot.slane %v61, 1
    %v63 = vadd.f32 %v61, %v62
    %v64 = vsel %vm45, %v33, 0.0
    %v65 = vsel %vm45, %v34, 0.0
    %v66 = vadd.f32 %v64, %v65
    %v67 = vrot.slane %v66, 4
    %v68 = vadd.f32 %v66, %v67
    %v69 = vrot.slane %v68, 2
    %v70 = vadd.f32 %v68, %v69
    %v71 = vrot.slane %v70, 1
    %v72 = vadd.f32 %v70, %v71
    %v73 = vsel %vm45, %v35, 0.0
    %v74 = vsel %vm45, %v36, 0.0
    %v75 = vadd.f32 %v73, %v74
    %v76 = vrot.slane %v75, 4
    %v77 = vadd.f32 %v75, %v76
    %v78 = vrot.slane %v77, 2
    %v79 = vadd.f32 %v77, %v78
    %v80 = vrot.slane %v79, 1
    %v81 = vadd.f32 %v79, %v80
    %v82 = vsel %vm45, %v37, 0.0
    %v83 = vsel %vm45, %v38, 0.0
    %v84 = vadd.f32 %v82, %v83
    %v85 = vrot.slane %v84, 4
    %v86 = vadd.f32 %v84, %v85
    %v87 = vrot.slane %v86, 2
    %v88 = vadd.f32 %v86, %v87
    %v89 = vrot.slane %v88, 1
    %v90 = vadd.f32 %v88, %v89
    %v91 = vsel %vm45, %v39, 0.0
    %v92 = vsel %vm45, %v40, 0.0
    %v93 = vadd.f32 %v91, %v92
    %v94 = vrot.slane %v93, 4
    %v95 = vadd.f32 %v93, %v94
    %v96 = vrot.slane %v95, 2
    %v97 = vadd.f32 %v95, %v96
    %v98 = vrot.slane %v97, 1
    %v99 = vadd.f32 %v97, %v98
    %v100 = vsel %vm45, %v41, 0.0
    %v101 = vsel %vm45, %v42, 0.0
    %v102 = vadd.f32 %v100, %v101
    %v103 = vrot.slane %v102, 4
    %v104 = vadd.f32 %v102, %v103
    %v105 = vrot.slane %v104, 2
    %v106 = vadd.f32 %v104, %v105
    %v107 = vrot.slane %v106, 1
    %v108 = vadd.f32 %v106, %v107
    %v109 = vsel %vm45, %v43, 0.0
    %v110 = vsel %vm45, %v44, 0.0
    %v111 = vadd.f32 %v109, %v110
    %v112 = vrot.slane %v111, 4
    %v113 = vadd.f32 %v111, %v112
    %v114 = vrot.slane %v113, 2
    %v115 = vadd.f32 %v113, %v114
    %v116 = vrot.slane %v115, 1
    %v117 = vadd.f32 %v115, %v116
    %v118 = vld [vmem:[%s1] sm:$0xff]
    %v119 = vld [vmem:[%s1 + $0x8] sm:$0xff]
    %v120 = vld [vmem:[%s1 + $0x10] sm:$0xff]
    %v121 = vld [vmem:[%s1 + $0x18] sm:$0xff]
    %v122 = vld [vmem:[%s1 + $0x20] sm:$0xff]
    %v123 = vld [vmem:[%s1 + $0x28] sm:$0xff]
    %v124 = vld [vmem:[%s1 + $0x30] sm:$0xff]
    %v125 = vld [vmem:[%s1 + $0x38] sm:$0xff]
    %vm134 = vcmask 1041409
    %v135 = vsel %vm134, %v63, %v54
    %vm136 = vcmask 1042434
    %v137 = vsel %vm136, %v72, %v135
    %vm138 = vcmask 1043459
    %v139 = vsel %vm138, %v81, %v137
    %vm140 = vcmask 1044484
    %v141 = vsel %vm140, %v90, %v139
    %vm142 = vcmask 1045509
    %v143 = vsel %vm142, %v99, %v141
    %vm144 = vcmask 1046534
    %v145 = vsel %vm144, %v108, %v143
    %vm146 = vcmask 1047559
    %v147 = vsel %vm146, %v117, %v145
    %v148 = vsel %vm45, %v147, 0
    %150 = vmatprep.subr.mxu0 0.0
    %151 = vmatpush1.msra.mxu0 %v118
    %152 = vmatprep.subr.mxu0 0.0
    %153 = vmatpush1.msra.mxu0 %v119
    %154 = vmatprep.subr.mxu0 0.0
    %155 = vmatpush1.msra.mxu0 %v120
    %156 = vmatprep.subr.mxu0 0.0
    %157 = vmatpush1.msra.mxu0 %v121
    %158 = vmatprep.subr.mxu0 0.0
    %159 = vmatpush1.msra.mxu0 %v122
    %160 = vmatprep.subr.mxu0 0.0
    %161 = vmatpush1.msra.mxu0 %v123
    %162 = vmatprep.subr.mxu0 0.0
    %163 = vmatpush1.msra.mxu0 %v124
    %164 = vmatprep.subr.mxu0 0.0
    %165 = vmatpush1.msra.mxu0 %v125
    %166 = vmatprep.subr.mxu0 0.0
    %167 = vmatpush1.msra.mxu0 0.0
    %168 = vmatprep.subr.mxu0 0.0
    %169 = vmatpush1.msra.mxu0 0.0
    %170 = vmatprep.subr.mxu0 0.0
    %171 = vmatpush1.msra.mxu0 0.0
    %172 = vmatprep.subr.mxu0 0.0
    %173 = vmatpush1.msra.mxu0 0.0
    %174 = vmatprep.subr.mxu0 0.0
    %175 = vmatpush1.msra.mxu0 0.0
    %176 = vmatprep.subr.mxu0 0.0
    %177 = vmatpush1.msra.mxu0 0.0
    %178 = vmatprep.subr.mxu0 0.0
    %179 = vmatpush1.msra.mxu0 0.0
    %180 = vmatprep.subr.mxu0 0.0
    %181 = vmatpush1.msra.mxu0 0.0
    %182 = vmatprep.subr.mxu0 0.0
    %183 = vmatpush1.msra.mxu0 0.0
    %184 = vmatprep.subr.mxu0 0.0
    %185 = vmatpush1.msra.mxu0 0.0
    %186 = vmatprep.subr.mxu0 0.0
    %187 = vmatpush1.msra.mxu0 0.0
    %188 = vmatprep.subr.mxu0 0.0
    %189 = vmatpush1.msra.mxu0 0.0
    %190 = vmatprep.subr.mxu0 0.0
    %191 = vmatpush1.msra.mxu0 0.0
    %192 = vmatprep.subr.mxu0 0.0
    %193 = vmatpush1.msra.mxu0 0.0
    %194 = vmatprep.subr.mxu0 0.0
    %195 = vmatpush1.msra.mxu0 0.0
    %196 = vmatprep.subr.mxu0 0.0
    %197 = vmatpush1.msra.mxu0 0.0
    %198 = vmatprep.subr.mxu0 0.0
    %199 = vmatpush1.msra.mxu0 0.0
    %200 = vmatprep.subr.mxu0 0.0
    %201 = vmatpush1.msra.mxu0 0.0
    %202 = vmatprep.subr.mxu0 0.0
    %203 = vmatpush1.msra.mxu0 0.0
    %204 = vmatprep.subr.mxu0 0.0
    %205 = vmatpush1.msra.mxu0 0.0
    %206 = vmatprep.subr.mxu0 0.0
    %207 = vmatpush1.msra.mxu0 0.0
    %208 = vmatprep.subr.mxu0 0.0
    %209 = vmatpush1.msra.mxu0 0.0
    %210 = vmatprep.subr.mxu0 0.0
    %211 = vmatpush1.msra.mxu0 0.0
    %212 = vmatprep.subr.mxu0 0.0
    %213 = vmatpush1.msra.mxu0 0.0
    %214 = vmatprep.mubr.f32.mxu0 0.0
    %215 = vmatmul.mubr.f32.gmra.mrb[0].mxu0 %v148
    %v216 = vpop.f32.mrb[0].mxu0
    %v217 = vadd.f32 0.0, %v216
    %v218 = vpop.f32.mrb[0].mxu0
    %219 = vdwg.mxu0
    %s220 = sld [smem:[#allocation2]]
    %v221 = vstv %s220
    %vm222 = vcmp.gt.f32.partialorder %v217, %v221
    %v223 = vsel %vm222, 1, 0
    %v224 = vcvt.s32.f32 %v223
    %vm225 = vcmask 31744
    %226 = vst.msk [vmem:[%s3] sm:$0xff] %vm225, %v224
    // Predicated region
    $region18: #{tpu_custom_call.1} parent=1 // pred_check
      _
    $region19: #{tpu_custom_call.1} parent=1 // pred_check_branch
      %228 = sbr.rel (0) target = $region21
    $region20: #{tpu_custom_call.1} parent=1 // pred_region
      _
    $region21: #{tpu_custom_call.1} parent=1 // pred_fallthru
      _
    // Predicated region
    $region22: #{tpu_custom_call.1} parent=1 // pred_check
      _
    $region23: #{tpu_custom_call.1} parent=1 // pred_check_branch
      %230 = sbr.rel (0) target = $region25
    $region24: #{tpu_custom_call.1} parent=1 // pred_region
      _
    $region25: #{tpu_custom_call.1} parent=1 // pred_fallthru
      _
    %231 = vsyncpa [#allocation4], 1

</llo_original>
